<compile_context>
chip_gen: v7x
topology: tpu7x:2x2x1
jax: 0.10.0
libtpu: 0.0.40
codegen_flags: <defaults>
</compile_context>

<pallas_src>
import functools
import math

import jax
import jax.numpy as jnp
from jax.experimental import pallas as pl
from jax.experimental.pallas import tpu as pltpu

EMBED_DIM = 50          # logical embedding dim (PyTorch spec)
EMBED_PAD = 64          # zero-padded per-table dim (128-byte bf16 rows)
FC1_IN = 2 * EMBED_PAD  # 128: fused concat K for fc1
H1 = 128
H2 = 64
DEFAULT_TILE_B = 2048   # batch rows per grid step (multiple of 128)


def _round_up(x, m):
    return ((x + m - 1) // m) * m


def nnmf_kernel(x_ref, w1_ref, b1_ref, w2_ref, b2_ref, w3_ref, b3_ref, out_ref):
    """One batch tile of fc1(concat)->relu->fc2->relu->fc3.

    Activations are (TB, feat): batch on sublanes, features on lanes.
    Weights are (in, out), VMEM-resident across the whole batch grid.
    """
    x = x_ref[...]                                   # (TB, 128) bf16, [u | it]

    # fc1: single K=128 bf16 MXU matmul, f32 accumulation; bias/ReLU in f32.
    h1 = (jnp.dot(x, w1_ref[...], preferred_element_type=jnp.float32)
          + b1_ref[...])                             # (TB, 128) f32
    h1 = jnp.maximum(h1, 0.0)

    # fc2: bf16 operands, f32 accumulation; bias/ReLU in f32.
    h2 = (jnp.dot(h1.astype(jnp.bfloat16), w2_ref[...],
                  preferred_element_type=jnp.float32)
          + b2_ref[...])                             # (TB, 64) f32
    h2 = jnp.maximum(h2, 0.0)

    # fc3: (1,64) . (TB,64)^T -> (1, TB), bf16 operands, f32 accumulation.
    # Batch lives on lanes, so the writeback is an unmasked lane-dense store.
    # TODO(synk): verify via pl.lower_as_mlir that this does not materialize a
    # full (TB,64) XLU transpose of h2; if MXU/XLU issue still binds after the
    # fc1 fusion, move to the weights-stationary / batch-on-lanes formulation.
    out_row = jax.lax.dot_general(
        w3_ref[...], h2.astype(jnp.bfloat16),
        dimension_numbers=(((1,), (1,)), ((), ())),
        preferred_element_type=jnp.float32)          # (1, TB) f32
    out_ref[...] = out_row + b3_ref[0]


def init_params(key, num_users, num_items, embedding_dim=EMBED_DIM):
    """f32 parameters mimicking PyTorch defaults (module semantics)."""
    ks = jax.random.split(key, 8)
    params = {}
    # nn.Embedding default init: N(0, 1)
    params["user_embedding"] = jax.random.normal(
        ks[0], (num_users, embedding_dim), jnp.float32)
    params["item_embedding"] = jax.random.normal(
        ks[1], (num_items, embedding_dim), jnp.float32)

    def linear(kw, kb, fan_in, fan_out):
        bound = 1.0 / math.sqrt(fan_in)
        w = jax.random.uniform(kw, (fan_in, fan_out), jnp.float32, -bound, bound)
        b = jax.random.uniform(kb, (1, fan_out), jnp.float32, -bound, bound)
        return w, b

    params["w1"], params["b1"] = linear(ks[2], ks[3], 2 * embedding_dim, H1)
    params["w2"], params["b2"] = linear(ks[4], ks[5], H1, H2)
    params["w3"], params["b3"] = linear(ks[6], ks[7], H2, 1)
    return params


def prepare_kernel_params(params):
    """Pad tables 50->64, build the fused (128,128) W1, cast MXU operands to bf16."""
    pad = EMBED_PAD - EMBED_DIM
    user_tab = jnp.pad(params["user_embedding"],
                       ((0, 0), (0, pad))).astype(jnp.bfloat16)
    item_tab = jnp.pad(params["item_embedding"],
                       ((0, 0), (0, pad))).astype(jnp.bfloat16)
    # Fused fc1 weight: rows [0:50] <- w1[:50], rows [64:114] <- w1[50:100];
    # the zero rows line up with the zero-padded embedding columns.
    w1 = params["w1"]                                  # (100, 128) f32
    w1f = jnp.zeros((FC1_IN, H1), jnp.float32)
    w1f = w1f.at[:EMBED_DIM].set(w1[:EMBED_DIM])
    w1f = w1f.at[EMBED_PAD:EMBED_PAD + EMBED_DIM].set(w1[EMBED_DIM:])
    return {
        "user_tab": user_tab,                          # (U, 64) bf16
        "item_tab": item_tab,                          # (I, 64) bf16
        "w1": w1f.astype(jnp.bfloat16),                # (128, 128) bf16
        "b1": params["b1"],                            # (1, 128) f32
        "w2": params["w2"].astype(jnp.bfloat16),       # (128, 64) bf16
        "b2": params["b2"],                            # (1, 64) f32
        "w3": params["w3"].reshape(1, H2).astype(jnp.bfloat16),  # (1, 64) bf16
        "b3": params["b3"].reshape(1),                 # (1,) f32 (SMEM)
    }


def _choose_tile(B, tile_b):
    """Batch tile: tiny single tile for small B; otherwise a multiple of 128
    capped so the grid has >= 2 steps (v7x has 2 TensorCores per chip)."""
    if B <= 128:
        return max(8, _round_up(B, 8))
    half = _round_up((B + 1) // 2, 128)
    return min(tile_b, half)


def nnmf_forward(kparams, user_id, item_id, tile_b=DEFAULT_TILE_B):
    B = user_id.shape[0]
    tb = _choose_tile(B, tile_b)
    padded_B = _round_up(B, tb)
    pad = padded_B - B
    # Multi-tile grids must keep the (1, tb) output lane-dense (unmasked vst).
    assert padded_B == tb or tb % 128 == 0, (tb, padded_B)

    uid = jnp.pad(user_id, (0, pad)) if pad else user_id
    iid = jnp.pad(item_id, (0, pad)) if pad else item_id

    # Embedding gather + concat in plain JAX (tables may be far larger than
    # VMEM).  Produces the fused fc1 activation directly: (padded_B, 128) bf16.
    # Padded rows gather row 0 and are sliced off afterwards (perf-only waste).
    # TODO(synk): fuse the gather into the kernel (scalar-prefetched ids +
    # per-row DMA, >=8 copies in flight) to drop the HBM round trip for the
    # gathered activations; measure first -- per-row DMA descriptor issue can
    # become the new critical slot.
    u = jnp.take(kparams["user_tab"], uid, axis=0)     # (padded_B, 64) bf16
    it = jnp.take(kparams["item_tab"], iid, axis=0)    # (padded_B, 64) bf16
    x = jnp.concatenate([u, it], axis=-1)              # (padded_B, 128) bf16

    def resident(shape):
        return pl.BlockSpec(shape, lambda i: (0,) * len(shape))

    out = pl.pallas_call(
        nnmf_kernel,
        out_shape=jax.ShapeDtypeStruct((1, padded_B), jnp.float32),
        grid=(padded_B // tb,),
        in_specs=[
            pl.BlockSpec((tb, FC1_IN), lambda i: (i, 0)),       # fused act tile
            resident((FC1_IN, H1)),                              # w1 (128,128)
            resident((1, H1)),                                   # b1
            resident((H1, H2)),                                  # w2
            resident((1, H2)),                                   # b2
            resident((1, H2)),                                   # w3 row
            pl.BlockSpec(memory_space=pltpu.MemorySpace.SMEM),   # b3 (1,)
        ],
        out_specs=pl.BlockSpec((1, tb), lambda i: (0, i)),
        compiler_params=pltpu.CompilerParams(
            dimension_semantics=("parallel",)),
    )(x,
      kparams["w1"], kparams["b1"],
      kparams["w2"], kparams["b2"],
      kparams["w3"], kparams["b3"])

    return out[0, :B].reshape(B, 1)


def nnmf_reference_f32(params, user_id, item_id):
    """Exact f32 reference of the PyTorch module."""
    hp = jax.lax.Precision.HIGHEST
    u = jnp.take(params["user_embedding"], user_id, axis=0)
    it = jnp.take(params["item_embedding"], item_id, axis=0)
    x = jnp.concatenate([u, it], axis=-1)
    x = jax.nn.relu(jnp.dot(x, params["w1"], precision=hp) + params["b1"][0])
    x = jax.nn.relu(jnp.dot(x, params["w2"], precision=hp) + params["b2"][0])
    return jnp.dot(x, params["w3"], precision=hp) + params["b3"][0]


def nnmf_reference_quantized(kparams, user_id, item_id):
    """Reference using the same bf16-rounded params/activations as the kernel."""
    hp = jax.lax.Precision.HIGHEST
    f32 = jnp.float32
    u = jnp.take(kparams["user_tab"], user_id, axis=0)
    it = jnp.take(kparams["item_tab"], item_id, axis=0)
    x = jnp.concatenate([u, it], axis=-1).astype(f32)
    h1 = jnp.dot(x, kparams["w1"].astype(f32), precision=hp) + kparams["b1"]
    h1 = jax.nn.relu(h1)
    h2 = (jnp.dot(h1.astype(jnp.bfloat16).astype(f32),
                  kparams["w2"].astype(f32), precision=hp)
          + kparams["b2"])
    h2 = jax.nn.relu(h2)
    h2b = h2.astype(jnp.bfloat16).astype(f32)
    return (jnp.dot(h2b, kparams["w3"].astype(f32).T, precision=hp)
            + kparams["b3"][0])


if __name__ == "__main__":
    num_users, num_items = 20, 30
    batch = 8

    key = jax.random.PRNGKey(0)
    k_params, k_user, k_item = jax.random.split(key, 3)

    params = init_params(k_params, num_users, num_items)
    kparams = prepare_kernel_params(params)

    user_id = jax.random.randint(k_user, (batch,), 0, num_users, jnp.int32)
    item_id = jax.random.randint(k_item, (batch,), 0, num_items, jnp.int32)

    fwd = jax.jit(functools.partial(nnmf_forward, kparams))
    out = jax.block_until_ready(fwd(user_id, item_id))
    assert out.shape == (batch, 1), out.shape

    # Tight check vs. the bf16-quantized reference (same numerics as kernel).
    ref_q = nnmf_reference_quantized(kparams, user_id, item_id)
    assert jnp.allclose(out, ref_q, atol=2e-3, rtol=2e-3), (out, ref_q)

    # Loose semantic check vs. the exact f32 PyTorch-equivalent forward.
    ref_f = nnmf_reference_f32(params, user_id, item_id)
    assert jnp.allclose(out, ref_f, atol=1e-1, rtol=1e-1), (out, ref_f)

    print("KERNEL_OK")
</pallas_src>

<mosaic_0001>
module attributes {stable_mosaic.version = 11 : i64} {
  func.func @nnmf_kernel(%arg0: i32, %arg1: memref<8x128xbf16, #tpu.memory_space<vmem>>, %arg2: memref<128x128xbf16, #tpu.memory_space<vmem>>, %arg3: memref<1x128xf32, #tpu.memory_space<vmem>>, %arg4: memref<128x64xbf16, #tpu.memory_space<vmem>>, %arg5: memref<1x64xf32, #tpu.memory_space<vmem>>, %arg6: memref<1x64xbf16, #tpu.memory_space<vmem>>, %arg7: memref<1xf32, #tpu.memory_space<smem>>, %arg8: memref<1x8xf32, #tpu.memory_space<vmem>>) attributes {dimension_semantics = [#tpu.dimension_semantics<parallel>], iteration_bounds = array<i64: 1>, scalar_prefetch = 0 : i64, scratch_operands = 0 : i64, tpu.core_type = #tpu.core_type<tc>, window_params = [{transform_indices = @transform_0, window_bounds = array<i64: 8, 128>}, {pipeline_mode = #tpu.pipeline_mode<synchronous>, transform_indices = @transform_1, window_bounds = array<i64: 128, 128>}, {pipeline_mode = #tpu.pipeline_mode<synchronous>, transform_indices = @transform_2, window_bounds = array<i64: 1, 128>}, {pipeline_mode = #tpu.pipeline_mode<synchronous>, transform_indices = @transform_3, window_bounds = array<i64: 128, 64>}, {pipeline_mode = #tpu.pipeline_mode<synchronous>, transform_indices = @transform_4, window_bounds = array<i64: 1, 64>}, {pipeline_mode = #tpu.pipeline_mode<synchronous>, transform_indices = @transform_5, window_bounds = array<i64: 1, 64>}, {transform_indices = @transform_6, window_bounds = array<i64: 1>}, {transform_indices = @transform_7, window_bounds = array<i64: 1, 8>}]} {
    %c0 = arith.constant 0 : index
    %c0_0 = arith.constant 0 : index
    %0 = vector.load %arg1[%c0, %c0_0] : memref<8x128xbf16, #tpu.memory_space<vmem>>, vector<8x128xbf16>
    %c0_1 = arith.constant 0 : index
    %c0_2 = arith.constant 0 : index
    %1 = vector.load %arg2[%c0_1, %c0_2] : memref<128x128xbf16, #tpu.memory_space<vmem>>, vector<128x128xbf16>
    %cst = arith.constant dense<0.000000e+00> : vector<8x128xf32>
    %2 = tpu.matmul %0, %1, %cst {dimension_numbers = #tpu.dot_dimension_numbers<[1], [0], [0], [1], [0, 0, 1, 1], [], []>} : vector<8x128xbf16>, vector<128x128xbf16>, vector<8x128xf32> -> vector<8x128xf32>
    %c0_3 = arith.constant 0 : index
    %c0_4 = arith.constant 0 : index
    %3 = vector.load %arg3[%c0_3, %c0_4] : memref<1x128xf32, #tpu.memory_space<vmem>>, vector<1x128xf32>
    %4 = vector.broadcast %3 : vector<1x128xf32> to vector<8x128xf32>
    %5 = arith.addf %2, %4 : vector<8x128xf32>
    %cst_5 = arith.constant 0.000000e+00 : f32
    %6 = vector.broadcast %cst_5 : f32 to vector<8x128xf32>
    %7 = arith.maximumf %5, %6 : vector<8x128xf32>
    %8 = arith.truncf %7 : vector<8x128xf32> to vector<8x128xbf16>
    %c0_6 = arith.constant 0 : index
    %c0_7 = arith.constant 0 : index
    %9 = vector.load %arg4[%c0_6, %c0_7] : memref<128x64xbf16, #tpu.memory_space<vmem>>, vector<128x64xbf16>
    %cst_8 = arith.constant dense<0.000000e+00> : vector<8x64xf32>
    %10 = tpu.matmul %8, %9, %cst_8 {dimension_numbers = #tpu.dot_dimension_numbers<[1], [0], [0], [1], [0, 0, 1, 1], [], []>} : vector<8x128xbf16>, vector<128x64xbf16>, vector<8x64xf32> -> vector<8x64xf32>
    %c0_9 = arith.constant 0 : index
    %c0_10 = arith.constant 0 : index
    %11 = vector.load %arg5[%c0_9, %c0_10] : memref<1x64xf32, #tpu.memory_space<vmem>>, vector<1x64xf32>
    %12 = vector.broadcast %11 : vector<1x64xf32> to vector<8x64xf32>
    %13 = arith.addf %10, %12 : vector<8x64xf32>
    %cst_11 = arith.constant 0.000000e+00 : f32
    %14 = vector.broadcast %cst_11 : f32 to vector<8x64xf32>
    %15 = arith.maximumf %13, %14 : vector<8x64xf32>
    %c0_12 = arith.constant 0 : index
    %c0_13 = arith.constant 0 : index
    %16 = vector.load %arg6[%c0_12, %c0_13] : memref<1x64xbf16, #tpu.memory_space<vmem>>, vector<1x64xbf16>
    %17 = arith.truncf %15 : vector<8x64xf32> to vector<8x64xbf16>
    %cst_14 = arith.constant dense<0.000000e+00> : vector<1x8xf32>
    %18 = tpu.matmul %16, %17, %cst_14 {dimension_numbers = #tpu.dot_dimension_numbers<[1], [1], [0], [0], [0, 0, 1, 0], [], []>} : vector<1x64xbf16>, vector<8x64xbf16>, vector<1x8xf32> -> vector<1x8xf32>
    %c0_15 = arith.constant 0 : index
    %19 = memref.load %arg7[%c0_15] : memref<1xf32, #tpu.memory_space<smem>>
    %20 = vector.broadcast %19 : f32 to vector<1x8xf32>
    %21 = arith.addf %18, %20 : vector<1x8xf32>
    %c0_16 = arith.constant 0 : index
    %c0_17 = arith.constant 0 : index
    %22 = vector.load %arg8[%c0_16, %c0_17] : memref<1x8xf32, #tpu.memory_space<vmem>>, vector<1x8xf32>
    tpu.vector_store %arg8[%c0_16, %c0_17], %21 {strides = array<i32>} : memref<1x8xf32, #tpu.memory_space<vmem>>, vector<1x8xf32>,
    return
  }
  func.func @transform_0(%arg0: i32) -> (i32, i32) {
    %c0_i32 = arith.constant 0 : i32
    %c0_i32_0 = arith.constant 0 : i32
    return %arg0, %c0_i32 : i32, i32
  }
  func.func @transform_1(%arg0: i32) -> (i32, i32) {
    %c0_i32 = arith.constant 0 : i32
    %c0_i32_0 = arith.constant 0 : i32
    %c0_i32_1 = arith.constant 0 : i32
    return %c0_i32, %c0_i32_0 : i32, i32
  }
  func.func @transform_2(%arg0: i32) -> (i32, i32) {
    %c0_i32 = arith.constant 0 : i32
    %c0_i32_0 = arith.constant 0 : i32
    %c0_i32_1 = arith.constant 0 : i32
    return %c0_i32, %c0_i32_0 : i32, i32
  }
  func.func @transform_3(%arg0: i32) -> (i32, i32) {
    %c0_i32 = arith.constant 0 : i32
    %c0_i32_0 = arith.constant 0 : i32
    %c0_i32_1 = arith.constant 0 : i32
    return %c0_i32, %c0_i32_0 : i32, i32
  }
  func.func @transform_4(%arg0: i32) -> (i32, i32) {
    %c0_i32 = arith.constant 0 : i32
    %c0_i32_0 = arith.constant 0 : i32
    %c0_i32_1 = arith.constant 0 : i32
    return %c0_i32, %c0_i32_0 : i32, i32
  }
  func.func @transform_5(%arg0: i32) -> (i32, i32) {
    %c0_i32 = arith.constant 0 : i32
    %c0_i32_0 = arith.constant 0 : i32
    %c0_i32_1 = arith.constant 0 : i32
    return %c0_i32, %c0_i32_0 : i32, i32
  }
  func.func @transform_6(%arg0: i32) -> i32 {
    %c0_i32 = arith.constant 0 : i32
    %c0_i32_0 = arith.constant 0 : i32
    return %c0_i32 : i32
  }
  func.func @transform_7(%arg0: i32) -> (i32, i32) {
    %c0_i32 = arith.constant 0 : i32
    %c0_i32_0 = arith.constant 0 : i32
    return %c0_i32, %arg0 : i32, i32
  }
}

</mosaic_0001>

<llo_original>
// kernel: nnmf_forward.1
$region0: #{nnmf_forward.1}
  #allocation0 [shape = 'u32[]', space=smem, size = 0x4, offset = 0x4, fixed_abs, tag = 'smem constant byte address 0x4 - core index']
  #allocation1 [shape = 'u32[144,128]{1,0:T(1,128)}', space=vmem, size = 0x12000, scoped, tag = 'internal scratch']
  #allocation2 [shape = 'f32[1]{0:T(128)S(6)}', space=smem, size = 0x200, scoped, tag = 'scoped memory for nnmf_forward.1']
  %s0 = inlined_call_operand.vmem [shape: bf16[8,128], index: 0, kind: input, shape index: {}]
  %s1 = inlined_call_operand.vmem [shape: bf16[128,128], index: 1, kind: input, shape index: {}]
  %s2 = inlined_call_operand.vmem [shape: f32[1,128], index: 2, kind: input, shape index: {}]
  %s3 = inlined_call_operand.hbm [shape: bf16[128,64], index: 3, kind: input, shape index: {}]
  %s4 = inlined_call_operand.vmem [shape: f32[1,64], index: 4, kind: input, shape index: {}]
  %s5 = inlined_call_operand.vmem [shape: bf16[1,64], index: 5, kind: input, shape index: {}]
  %s6 = inlined_call_operand.<no memory space> [shape: f32[1], index: 6, kind: input, shape index: {}]
  %s7 = inlined_call_operand.hbm [shape: f32[1,8], index: 7, kind: output, shape index: {}]
  %s8 = sld [smem:[#allocation0]]
  $region42: #{nnmf_forward.1} parent=0
    _
  %s10 = ssub.s32 1, %s8
  %s11 = scalar_select 0, %s10, %s8
  %12 = sst [smem:[#allocation2]] %s6
  $region1: #{nnmf_forward.1} parent=0
    #allocation3 [shape = 'u8[32768]{0}', space=vmem, size = 0x8000, scoped, tag = 'input window, operand 3, single buffered']
    #allocation4 [shape = 's32[1]{0}', space=sflag, size = 0x4, scoped, tag = 'scoped memory for nnmf_forward.1']
    #allocation5 [shape = 's32[1]{0}', space=sflag, size = 0x4, scoped, tag = 'scoped memory for nnmf_forward.1']
    #allocation6 [shape = 'u8[512]{0}', space=vmem, size = 0x400, scoped, tag = 'output window, operand 0, single buffered']
    %13 = vsyncpa [#allocation4], 0
    %14 = vsyncpa [#allocation5], 0
    // Predicated region
    $region2: #{nnmf_forward.1} parent=1 // pred_check
      _
    $region3: #{nnmf_forward.1} parent=1 // pred_check_branch
      %16 = sbr.rel (0) target = $region5
    $region4: #{nnmf_forward.1} parent=1 // pred_region
      _
    $region5: #{nnmf_forward.1} parent=1 // pred_fallthru
      _
    // Predicated region
    $region6: #{nnmf_forward.1} parent=1 // pred_check
      _
    $region7: #{nnmf_forward.1} parent=1 // pred_check_branch
      %18 = sbr.rel (0) target = $region9
    $region8: #{nnmf_forward.1} parent=1 // pred_region
      _
    $region9: #{nnmf_forward.1} parent=1 // pred_fallthru
      _
    // Predicated region
    $region10: #{nnmf_forward.1} parent=1 // pred_check
      _
    $region11: #{nnmf_forward.1} parent=1 // pred_check_branch
      %20 = sbr.rel (0) target = $region13
    $region12: #{nnmf_forward.1} parent=1 // pred_region
      _
    $region13: #{nnmf_forward.1} parent=1 // pred_fallthru
      _
    // Predicated region
    $region14: #{nnmf_forward.1} parent=1 // pred_check
      _
    $region15: #{nnmf_forward.1} parent=1 // pred_check_branch
      %22 = sbr.rel (0) target = $region17
    $region16: #{nnmf_forward.1} parent=1 // pred_region
      %s24 = ssub.s32 1024, 1024
      %25 = vsyncadd [#allocation4], %s24
      %s26 = sshll.u32 [#allocation3], 4
      %s27 = int_to_ptr.vmem [resolvable:$true] %s26
      %32 = dma.hbm_to_vmem [thread:$0]  %s3, 1024, %s27, [#allocation4], 64, 64, 4
    $region17: #{nnmf_forward.1} parent=1 // pred_fallthru
      _
    // Predicated region
    $region18: #{nnmf_forward.1} parent=1 // pred_check
      _
    $region19: #{nnmf_forward.1} parent=1 // pred_check_branch
      %34 = sbr.rel (0) target = $region21
    $region20: #{nnmf_forward.1} parent=1 // pred_region
      _
    $region21: #{nnmf_forward.1} parent=1 // pred_fallthru
      _
    // Predicated region
    $region22: #{nnmf_forward.1} parent=1 // pred_check
      _
    $region23: #{nnmf_forward.1} parent=1 // pred_check_branch
      %36 = sbr.rel (0) target = $region25
    $region24: #{nnmf_forward.1} parent=1 // pred_region
      _
    $region25: #{nnmf_forward.1} parent=1 // pred_fallthru
      _
    // Predicated region
    $region26: #{nnmf_forward.1} parent=1 // pred_check
      _
    $region27: #{nnmf_forward.1} parent=1 // pred_check_branch
      %38 = sbr.rel (0) target = $region29
    $region28: #{nnmf_forward.1} parent=1 // pred_region
      _
    $region29: #{nnmf_forward.1} parent=1 // pred_fallthru
      _
    // Predicated region
    $region30: #{nnmf_forward.1} parent=1 // pred_check
      _
    $region31: #{nnmf_forward.1} parent=1 // pred_check_branch
      %40 = sbr.rel (0) target = $region33
    $region32: #{nnmf_forward.1} parent=1 // pred_region
      %41 = dma.done [#allocation4], 1024
    $region33: #{nnmf_forward.1} parent=1 // pred_fallthru
      _
    %v43 = vld [vmem:[%s0] sm:$0xf]
    %v44 = vld [vmem:[%s1] sm:$0xf]
    %v45 = vld [vmem:[%s1 + $0x4] sm:$0xf]
    %v46 = vld [vmem:[%s1 + $0x8] sm:$0xf]
    %v47 = vld [vmem:[%s1 + $0xc] sm:$0xf]
    %v48 = vld [vmem:[%s1 + $0x10] sm:$0xf]
    %v49 = vld [vmem:[%s1 + $0x14] sm:$0xf]
    %v50 = vld [vmem:[%s1 + $0x18] sm:$0xf]
    %v51 = vld [vmem:[%s1 + $0x1c] sm:$0xf]
    %v52 = vld [vmem:[%s1 + $0x20] sm:$0xf]
    %v53 = vld [vmem:[%s1 + $0x24] sm:$0xf]
    %v54 = vld [vmem:[%s1 + $0x28] sm:$0xf]
    %v55 = vld [vmem:[%s1 + $0x2c] sm:$0xf]
    %v56 = vld [vmem:[%s1 + $0x30] sm:$0xf]
    %v57 = vld [vmem:[%s1 + $0x34] sm:$0xf]
    %v58 = vld [vmem:[%s1 + $0x38] sm:$0xf]
    %v59 = vld [vmem:[%s1 + $0x3c] sm:$0xf]
    %v60 = vld [vmem:[%s2] sm:$0x1]
    %v62 = vlaneseq
    %v63 = vshrl.u32 %v62, 7
    %v64 = vsub.s32 0, %v63
    %v65 = vrot.slane %v60, %v64
    %v83 = vunpack.c.l.b16 %v44
    %v84 = vunpack.c.l.b16 %v45
    %v85 = vunpack.c.l.b16 %v46
    %v86 = vunpack.c.l.b16 %v47
    %v87 = vunpack.c.l.b16 %v48
    %v88 = vunpack.c.l.b16 %v49
    %v89 = vunpack.c.l.b16 %v50
    %v90 = vunpack.c.l.b16 %v51
    %v91 = vunpack.c.l.b16 %v52
    %v92 = vunpack.c.l.b16 %v53
    %v93 = vunpack.c.l.b16 %v54
    %v94 = vunpack.c.l.b16 %v55
    %v95 = vunpack.c.l.b16 %v56
    %v96 = vunpack.c.l.b16 %v57
    %v97 = vunpack.c.l.b16 %v58
    %v98 = vunpack.c.l.b16 %v59
    %v99 = vpack.c.b16 %v84, %v83
    %v100 = vpack.c.b16 %v86, %v85
    %v101 = vpack.c.b16 %v88, %v87
    %v102 = vpack.c.b16 %v90, %v89
    %v103 = vpack.c.b16 %v92, %v91
    %v104 = vpack.c.b16 %v94, %v93
    %v105 = vpack.c.b16 %v96, %v95
    %v106 = vpack.c.b16 %v98, %v97
    %115 = vmatprep.subr.bf16.mxu0 0
    %116 = vmatpush1.bf16.msra.mxu0 %v99
    %117 = vmatprep.subr.bf16.mxu0 0
    %118 = vmatpush1.bf16.msra.mxu0 %v100
    %119 = vmatprep.subr.bf16.mxu0 0
    %120 = vmatpush1.bf16.msra.mxu0 %v101
    %121 = vmatprep.subr.bf16.mxu0 0
    %122 = vmatpush1.bf16.msra.mxu0 %v102
    %123 = vmatprep.subr.bf16.mxu0 0
    %124 = vmatpush1.bf16.msra.mxu0 %v103
    %125 = vmatprep.subr.bf16.mxu0 0
    %126 = vmatpush1.bf16.msra.mxu0 %v104
    %127 = vmatprep.subr.bf16.mxu0 0
    %128 = vmatpush1.bf16.msra.mxu0 %v105
    %129 = vmatprep.subr.bf16.mxu0 0
    %130 = vmatpush1.bf16.msra.mxu0 %v106
    %131 = vmatprep.subr.bf16.mxu0 0
    %132 = vmatpush1.bf16.msra.mxu0 0
    %133 = vmatprep.subr.bf16.mxu0 0
    %134 = vmatpush1.bf16.msra.mxu0 0
    %135 = vmatprep.subr.bf16.mxu0 0
    %136 = vmatpush1.bf16.msra.mxu0 0
    %137 = vmatprep.subr.bf16.mxu0 0
    %138 = vmatpush1.bf16.msra.mxu0 0
    %139 = vmatprep.subr.bf16.mxu0 0
    %140 = vmatpush1.bf16.msra.mxu0 0
    %141 = vmatprep.subr.bf16.mxu0 0
    %142 = vmatpush1.bf16.msra.mxu0 0
    %143 = vmatprep.subr.bf16.mxu0 0
    %144 = vmatpush1.bf16.msra.mxu0 0
    %145 = vmatprep.subr.bf16.mxu0 0
    %146 = vmatpush1.bf16.msra.mxu0 0
    %147 = vmatprep.mubr.bf16.mxu0 0
    %148 = vmatmul.mubr.bf16.gmra.mrb[0].mxu0 %v43
    %v149 = vpop.f32.mrb[0].mxu0
    %v150 = vadd.f32 %v65, %v149
    %v151 = vpop.f32.mrb[0].mxu0
    %v152 = vpop.f32.mrb[0].mxu0
    %v153 = vpop.f32.mrb[0].mxu0
    %154 = vdwg.mxu0
    %v155 = vmax.f32 %v150, 0.0
    %v156 = vpack.c.bf16 %v155, %v155
    %v157 = vld [vmem:[#allocation3] sm:$0xf]
    %v158 = vld [vmem:[#allocation3 + $0x4] sm:$0xf]
    %v159 = vld [vmem:[#allocation3 + $0x8] sm:$0xf]
    %v160 = vld [vmem:[#allocation3 + $0xc] sm:$0xf]
    %v161 = vld [vmem:[#allocation3 + $0x10] sm:$0xf]
    %v162 = vld [vmem:[#allocation3 + $0x14] sm:$0xf]
    %v163 = vld [vmem:[#allocation3 + $0x18] sm:$0xf]
    %v164 = vld [vmem:[#allocation3 + $0x1c] sm:$0xf]
    %v165 = vld [vmem:[#allocation3 + $0x20] sm:$0xf]
    %v166 = vld [vmem:[#allocation3 + $0x24] sm:$0xf]
    %v167 = vld [vmem:[#allocation3 + $0x28] sm:$0xf]
    %v168 = vld [vmem:[#allocation3 + $0x2c] sm:$0xf]
    %v169 = vld [vmem:[#allocation3 + $0x30] sm:$0xf]
    %v170 = vld [vmem:[#allocation3 + $0x34] sm:$0xf]
    %v171 = vld [vmem:[#allocation3 + $0x38] sm:$0xf]
    %v172 = vld [vmem:[#allocation3 + $0x3c] sm:$0xf]
    %v173 = vld [vmem:[%s4] sm:$0x1]
    %v175 = vlaneseq
    %v176 = vshrl.u32 %v175, 7
    %v177 = vsub.s32 0, %v176
    %v178 = vrot.slane %v173, %v177
    %v196 = vunpack.c.l.b16 %v157
    %v197 = vunpack.c.l.b16 %v158
    %v198 = vunpack.c.l.b16 %v159
    %v199 = vunpack.c.l.b16 %v160
    %v200 = vunpack.c.l.b16 %v161
    %v201 = vunpack.c.l.b16 %v162
    %v202 = vunpack.c.l.b16 %v163
    %v203 = vunpack.c.l.b16 %v164
    %v204 = vunpack.c.l.b16 %v165
    %v205 = vunpack.c.l.b16 %v166
    %v206 = vunpack.c.l.b16 %v167
    %v207 = vunpack.c.l.b16 %v168
    %v208 = vunpack.c.l.b16 %v169
    %v209 = vunpack.c.l.b16 %v170
    %v210 = vunpack.c.l.b16 %v171
    %v211 = vunpack.c.l.b16 %v172
    %v212 = vpack.c.b16 %v197, %v196
    %v213 = vpack.c.b16 %v199, %v198
    %v214 = vpack.c.b16 %v201, %v200
    %v215 = vpack.c.b16 %v203, %v202
    %v216 = vpack.c.b16 %v205, %v204
    %v217 = vpack.c.b16 %v207, %v206
    %v218 = vpack.c.b16 %v209, %v208
    %v219 = vpack.c.b16 %v211, %v210
    %228 = vmatprep.subr.bf16.mxu0 0
    %229 = vmatpush1.bf16.msra.mxu0 %v212
    %230 = vmatprep.subr.bf16.mxu0 0
    %231 = vmatpush1.bf16.msra.mxu0 %v213
    %232 = vmatprep.subr.bf16.mxu0 0
    %233 = vmatpush1.bf16.msra.mxu0 %v214
    %234 = vmatprep.subr.bf16.mxu0 0
    %235 = vmatpush1.bf16.msra.mxu0 %v215
    %236 = vmatprep.subr.bf16.mxu0 0
    %237 = vmatpush1.bf16.msra.mxu0 %v216
    %238 = vmatprep.subr.bf16.mxu0 0
    %239 = vmatpush1.bf16.msra.mxu0 %v217
    %240 = vmatprep.subr.bf16.mxu0 0
    %241 = vmatpush1.bf16.msra.mxu0 %v218
    %242 = vmatprep.subr.bf16.mxu0 0
    %243 = vmatpush1.bf16.msra.mxu0 %v219
    %244 = vmatprep.subr.bf16.mxu0 0
    %245 = vmatpush1.bf16.msra.mxu0 0
    %246 = vmatprep.subr.bf16.mxu0 0
    %247 = vmatpush1.bf16.msra.mxu0 0
    %248 = vmatprep.subr.bf16.mxu0 0
    %249 = vmatpush1.bf16.msra.mxu0 0
    %250 = vmatprep.subr.bf16.mxu0 0
    %251 = vmatpush1.bf16.msra.mxu0 0
    %252 = vmatprep.subr.bf16.mxu0 0
    %253 = vmatpush1.bf16.msra.mxu0 0
    %254 = vmatprep.subr.bf16.mxu0 0
    %255 = vmatpush1.bf16.msra.mxu0 0
    %256 = vmatprep.subr.bf16.mxu0 0
    %257 = vmatpush1.bf16.msra.mxu0 0
    %258 = vmatprep.subr.bf16.mxu0 0
    %259 = vmatpush1.bf16.msra.mxu0 0
    %260 = vmatprep.mubr.bf16.mxu0 0
    %261 = vmatmul.mubr.bf16.gmra.mrb[0].mxu0 %v156
    %v262 = vpop.f32.mrb[0].mxu0
    %v263 = vadd.f32 %v178, %v262
    %v264 = vpop.f32.mrb[0].mxu0
    %v265 = vpop.f32.mrb[0].mxu0
    %v266 = vpop.f32.mrb[0].mxu0
    %267 = vdwg.mxu0
    %v268 = vmax.f32 %v263, 0.0
    %v269 = vld [vmem:[%s5] sm:$0x1]
    %v270 = vpack.c.bf16 %v268, %v268
    %s271 = sld [smem:[#allocation2]]
    %v272 = vstv %s271
    %vm273 = vcmask 523264
    %v275 = vsel %vm273, %v269, 0
    %v278 = vsel %vm273, %v270, 0
    %280 = vmatprep.subr.bf16.mxu0 0
    %281 = vmatpush1.bf16.xpose.msra.mxu0 %v278
    %282 = vmatprep.subr.bf16.mxu0 0
    %283 = vmatpush1.bf16.xpose.msra.mxu0 0
    %284 = vmatprep.subr.bf16.mxu0 0
    %285 = vmatpush1.bf16.xpose.msra.mxu0 0
    %286 = vmatprep.subr.bf16.mxu0 0
    %287 = vmatpush1.bf16.xpose.msra.mxu0 0
    %288 = vmatprep.subr.bf16.mxu0 0
    %289 = vmatpush1.bf16.xpose.msra.mxu0 0
    %290 = vmatprep.subr.bf16.mxu0 0
    %291 = vmatpush1.bf16.xpose.msra.mxu0 0
    %292 = vmatprep.subr.bf16.mxu0 0
    %293 = vmatpush1.bf16.xpose.msra.mxu0 0
    %294 = vmatprep.subr.bf16.mxu0 0
    %295 = vmatpush1.bf16.xpose.msra.mxu0 0
    %296 = vmatprep.subr.bf16.mxu0 0
    %297 = vmatpush1.bf16.xpose.msra.mxu0 0
    %298 = vmatprep.subr.bf16.mxu0 0
    %299 = vmatpush1.bf16.xpose.msra.mxu0 0
    %300 = vmatprep.subr.bf16.mxu0 0
    %301 = vmatpush1.bf16.xpose.msra.mxu0 0
    %302 = vmatprep.subr.bf16.mxu0 0
    %303 = vmatpush1.bf16.xpose.msra.mxu0 0
    %304 = vmatprep.subr.bf16.mxu0 0
    %305 = vmatpush1.bf16.xpose.msra.mxu0 0
    %306 = vmatprep.subr.bf16.mxu0 0
    %307 = vmatpush1.bf16.xpose.msra.mxu0 0
    %308 = vmatprep.subr.bf16.mxu0 0
    %309 = vmatpush1.bf16.xpose.msra.mxu0 0
    %310 = vmatprep.subr.bf16.mxu0 0
    %311 = vmatpush1.bf16.xpose.msra.mxu0 0
    %312 = vmatprep.mubr.bf16.mxu0 0
    %313 = vmatmul.mubr.bf16.gmra.mrb[0].mxu0 %v275
    %v314 = vpop.f32.mrb[0].mxu0
    %v315 = vadd.f32 %v272, %v314
    %v316 = vpop.f32.mrb[0].mxu0
    %v317 = vpop.f32.mrb[0].mxu0
    %v318 = vpop.f32.mrb[0].mxu0
    %319 = vdwg.mxu0
    %vm320 = vcmask 57344
    %321 = vst.msk [vmem:[#allocation6] sm:$0x1] %vm320, %v315
    // Predicated region
    $region34: #{nnmf_forward.1} parent=1 // pred_check
      _
    $region35: #{nnmf_forward.1} parent=1 // pred_check_branch
      %323 = sbr.rel (0) target = $region37
    $region36: #{nnmf_forward.1} parent=1 // pred_region
      %s325 = ssub.s32 16, 16
      %326 = vsyncadd [#allocation5], %s325
      %s328 = sshll.u32 [#allocation6], 4
      %s329 = int_to_ptr.vmem [resolvable:$true] %s328
      %331 = dma.vmem_to_hbm [thread:$0]  %s329, 16, %s7, [#allocation5]
    $region37: #{nnmf_forward.1} parent=1 // pred_fallthru
      _
    // Predicated region
    $region38: #{nnmf_forward.1} parent=1 // pred_check
      _
    $region39: #{nnmf_forward.1} parent=1 // pred_check_branch
      %333 = sbr.rel (0) target = $region41
    $region40: #{nnmf_forward.1} parent=1 // pred_region
      %334 = dma.done [#allocation5], 16
    $region41: #{nnmf_forward.1} parent=1 // pred_fallthru
      _
    %335 = vsyncpa [#allocation4], 1
    %336 = vsyncpa [#allocation5], 1

</llo_original>
